<compile_context>
chip_gen: v7x
topology: tpu7x:2x2x1
jax: 0.10.0
libtpu: 0.0.40
codegen_flags: <defaults>
</compile_context>

<pallas_src>
import functools

import jax
import jax.numpy as jnp
from jax.experimental import pallas as pl
from jax.experimental.pallas import tpu as pltpu

IN_DIM = 12
HID_DIM = 256
OUT_DIM = 6
OUT_PAD = 8          # 6 valid output columns zero-padded to 8 (32 B/row, contiguous DMA)
NEG_SLOPE = 0.01     # nn.LeakyReLU default negative_slope


def _leaky_relu(x):
    return jnp.where(x > 0, x, NEG_SLOPE * x)


def _round_up(n, m):
    return (n + m - 1) // m * m


def mlp_kernel(x_ref, w1_ref, b1_ref, w2_ref, b2_ref, w3_ref, b3_ref, o_ref):
    """Fused 3-layer MLP on one (bt, 12) batch tile."""
    mm_dtype = w1_ref.dtype  # bf16 (default) or f32

    x = x_ref[...].astype(mm_dtype)                        # (bt, 12)
    h1 = jnp.dot(x, w1_ref[...],                           # (bt, 256)
                 preferred_element_type=jnp.float32) + b1_ref[...]
    h1 = _leaky_relu(h1)

    h2 = jnp.dot(h1.astype(mm_dtype), w2_ref[...],         # (bt, 256)
                 preferred_element_type=jnp.float32) + b2_ref[...]
    h2 = _leaky_relu(h2)

    out = jnp.dot(h2.astype(mm_dtype), w3_ref[...],        # (bt, 8)
                  preferred_element_type=jnp.float32) + b3_ref[...]
    o_ref[...] = out.astype(o_ref.dtype)


def prepare_params(params, *, use_bf16=True):
    """One-time parameter prep (hoisted out of the per-call hot path).

    Weights are cast to the MXU input dtype; w3/b3 are zero-padded from 6 to 8 output
    columns.  Zero columns are mathematically inert; the wrapper slices them off.
    """
    w1, b1, w2, b2, w3, b3 = params
    mm_dtype = jnp.bfloat16 if use_bf16 else jnp.float32
    w1p = w1.astype(mm_dtype)                                            # (12, 256)
    w2p = w2.astype(mm_dtype)                                            # (256, 256)
    w3p = jnp.zeros((HID_DIM, OUT_PAD), mm_dtype).at[:, :OUT_DIM].set(
        w3.astype(mm_dtype))                                             # (256, 8)
    b1p = jnp.asarray(b1, jnp.float32).reshape(1, HID_DIM)
    b2p = jnp.asarray(b2, jnp.float32).reshape(1, HID_DIM)
    b3p = jnp.zeros((1, OUT_PAD), jnp.float32).at[:, :OUT_DIM].set(
        jnp.asarray(b3, jnp.float32).reshape(1, OUT_DIM))
    return w1p, b1p, w2p, b2p, w3p, b3p


@functools.partial(jax.jit, static_argnames=("batch_tile",))
def nn_model_forward(x, prepped, *, batch_tile=2048):
    """x: (B, 12) float32 -> (B, 6) float32."""
    w1, b1, w2, b2, w3, b3 = prepped
    B, in_dim = x.shape
    assert in_dim == IN_DIM

    # Batch tile: multiple of 8 (sublane); clamp so the grid has >= 2 steps whenever
    # B > 8 (keeps both v7x TensorCores busy via the "parallel" batch axis).
    bt = min(batch_tile, max(8, _round_up(pl.cdiv(B, 2), 8)))
    Bp = _round_up(B, bt)            # zero-pad batch so the grid covers it exactly
    grid = (Bp // bt,)

    xp = x if Bp == B else jnp.zeros((Bp, IN_DIM), x.dtype).at[:B].set(x)

    # Advisory cost for the XLA scheduler (post-fix traffic: unpadded input, 8-lane output).
    wbytes = (w1.size * w1.dtype.itemsize + w2.size * w2.dtype.itemsize
              + w3.size * w3.dtype.itemsize
              + (b1.size + b2.size + b3.size) * 4)
    cost = pl.CostEstimate(
        flops=2 * Bp * (IN_DIM * HID_DIM + HID_DIM * HID_DIM + HID_DIM * OUT_PAD),
        transcendentals=0,
        bytes_accessed=Bp * IN_DIM * 4 + Bp * OUT_PAD * 4 + wbytes,
    )

    out_padded = pl.pallas_call(
        mlp_kernel,
        out_shape=jax.ShapeDtypeStruct((Bp, OUT_PAD), jnp.float32),
        grid_spec=pltpu.PrefetchScalarGridSpec(
            num_scalar_prefetch=0,
            grid=grid,
            in_specs=[
                # x: last block dim == full array dim (12) -> legal, contiguous DMA, no pad.
                pl.BlockSpec((bt, IN_DIM), lambda i: (i, 0)),
                pl.BlockSpec((IN_DIM, HID_DIM), lambda i: (0, 0)),   # w1 (resident)
                pl.BlockSpec((1, HID_DIM), lambda i: (0, 0)),        # b1
                pl.BlockSpec((HID_DIM, HID_DIM), lambda i: (0, 0)),  # w2
                pl.BlockSpec((1, HID_DIM), lambda i: (0, 0)),        # b2
                pl.BlockSpec((HID_DIM, OUT_PAD), lambda i: (0, 0)),  # w3 (256, 8)
                pl.BlockSpec((1, OUT_PAD), lambda i: (0, 0)),        # b3 (1, 8)
            ],
            out_specs=pl.BlockSpec((bt, OUT_PAD), lambda i: (i, 0)),
        ),
        compiler_params=pltpu.CompilerParams(dimension_semantics=("parallel",)),
        cost_estimate=cost,
    )(xp, w1, b1, w2, b2, w3, b3)

    # Strip batch padding and the 2 zero output columns.
    return out_padded[:B, :OUT_DIM]


def init_params(key):
    """Deterministic init matching PyTorch nn.Linear's default U(-1/sqrt(fan_in), +1/sqrt(fan_in)).
    Weights stored as (in_features, out_features); biases as (1, out_features)."""
    def linear(key, fan_in, fan_out):
        kw, kb = jax.random.split(key)
        bound = 1.0 / jnp.sqrt(fan_in)
        w = jax.random.uniform(kw, (fan_in, fan_out), jnp.float32, -bound, bound)
        b = jax.random.uniform(kb, (1, fan_out), jnp.float32, -bound, bound)
        return w, b

    k1, k2, k3 = jax.random.split(key, 3)
    w1, b1 = linear(k1, IN_DIM, HID_DIM)
    w2, b2 = linear(k2, HID_DIM, HID_DIM)
    w3, b3 = linear(k3, HID_DIM, OUT_DIM)
    return w1, b1, w2, b2, w3, b3


def reference_forward(x, params):
    w1, b1, w2, b2, w3, b3 = params
    h1 = _leaky_relu(x @ w1 + b1)
    h2 = _leaky_relu(h1 @ w2 + b2)
    return h2 @ w3 + b3


if __name__ == "__main__":
    key = jax.random.PRNGKey(0)
    kx, kx2, kp = jax.random.split(key, 3)
    params = init_params(kp)

    # --- Test 1: small batch, f32 matmul path (tight tolerance vs. f32 reference) ---
    B = 8
    x = jax.random.normal(kx, (B, IN_DIM), jnp.float32)
    prepped_f32 = prepare_params(params, use_bf16=False)
    out = jax.block_until_ready(nn_model_forward(x, prepped_f32))
    ref = reference_forward(x, params)
    assert out.shape == (B, OUT_DIM), out.shape
    assert jnp.allclose(out, ref, atol=1e-5, rtol=1e-5), "f32 mismatch vs. reference"

    # --- Test 2: ragged batch, multi-step grid, bf16 MXU path (relaxed tolerance) ---
    B2 = 200   # bt -> 104, Bp -> 208, grid -> 2 steps: exercises padding + >=2-step grid
    x2 = jax.random.normal(kx2, (B2, IN_DIM), jnp.float32)
    prepped_bf16 = prepare_params(params, use_bf16=True)
    out2 = jax.block_until_ready(nn_model_forward(x2, prepped_bf16, batch_tile=128))
    ref2 = reference_forward(x2, params)
    assert out2.shape == (B2, OUT_DIM), out2.shape
    assert jnp.allclose(out2, ref2, atol=5e-2, rtol=5e-2), "bf16 mismatch vs. reference"

    print("KERNEL_OK")
</pallas_src>

<mosaic_0001>
module attributes {stable_mosaic.version = 11 : i64} {
  func.func @mlp_kernel(%arg0: i32, %arg1: memref<8x12xf32, #tpu.memory_space<vmem>>, %arg2: memref<12x256xf32, #tpu.memory_space<vmem>>, %arg3: memref<1x256xf32, #tpu.memory_space<vmem>>, %arg4: memref<256x256xf32, #tpu.memory_space<vmem>>, %arg5: memref<1x256xf32, #tpu.memory_space<vmem>>, %arg6: memref<256x8xf32, #tpu.memory_space<vmem>>, %arg7: memref<1x8xf32, #tpu.memory_space<vmem>>, %arg8: memref<8x8xf32, #tpu.memory_space<vmem>>) attributes {dimension_semantics = [#tpu.dimension_semantics<parallel>], iteration_bounds = array<i64: 1>, scalar_prefetch = 0 : i64, scratch_operands = 0 : i64, tpu.core_type = #tpu.core_type<tc>, window_params = [{transform_indices = @transform_0, window_bounds = array<i64: 8, 12>}, {pipeline_mode = #tpu.pipeline_mode<synchronous>, transform_indices = @transform_1, window_bounds = array<i64: 12, 256>}, {pipeline_mode = #tpu.pipeline_mode<synchronous>, transform_indices = @transform_2, window_bounds = array<i64: 1, 256>}, {pipeline_mode = #tpu.pipeline_mode<synchronous>, transform_indices = @transform_3, window_bounds = array<i64: 256, 256>}, {pipeline_mode = #tpu.pipeline_mode<synchronous>, transform_indices = @transform_4, window_bounds = array<i64: 1, 256>}, {pipeline_mode = #tpu.pipeline_mode<synchronous>, transform_indices = @transform_5, window_bounds = array<i64: 256, 8>}, {pipeline_mode = #tpu.pipeline_mode<synchronous>, transform_indices = @transform_6, window_bounds = array<i64: 1, 8>}, {transform_indices = @transform_7, window_bounds = array<i64: 8, 8>}]} {
    %c0 = arith.constant 0 : index
    %c0_0 = arith.constant 0 : index
    %0 = vector.load %arg1[%c0, %c0_0] : memref<8x12xf32, #tpu.memory_space<vmem>>, vector<8x12xf32>
    %c0_1 = arith.constant 0 : index
    %c0_2 = arith.constant 0 : index
    %1 = vector.load %arg2[%c0_1, %c0_2] : memref<12x256xf32, #tpu.memory_space<vmem>>, vector<12x256xf32>
    %cst = arith.constant dense<0.000000e+00> : vector<8x256xf32>
    %2 = tpu.matmul %0, %1, %cst {dimension_numbers = #tpu.dot_dimension_numbers<[1], [0], [0], [1], [0, 0, 1, 1], [], []>} : vector<8x12xf32>, vector<12x256xf32>, vector<8x256xf32> -> vector<8x256xf32>
    %c0_3 = arith.constant 0 : index
    %c0_4 = arith.constant 0 : index
    %3 = vector.load %arg3[%c0_3, %c0_4] : memref<1x256xf32, #tpu.memory_space<vmem>>, vector<1x256xf32>
    %4 = vector.broadcast %3 : vector<1x256xf32> to vector<8x256xf32>
    %5 = arith.addf %2, %4 : vector<8x256xf32>
    %cst_5 = arith.constant 0.000000e+00 : f32
    %6 = vector.broadcast %cst_5 : f32 to vector<8x256xf32>
    %7 = arith.cmpf ogt, %5, %6 : vector<8x256xf32>
    %cst_6 = arith.constant 0.00999999977 : f32
    %8 = vector.broadcast %cst_6 : f32 to vector<8x256xf32>
    %9 = arith.mulf %8, %5 : vector<8x256xf32>
    %10 = arith.select %7, %5, %9 : vector<8x256xi1>, vector<8x256xf32>
    %c0_7 = arith.constant 0 : index
    %c0_8 = arith.constant 0 : index
    %11 = vector.load %arg4[%c0_7, %c0_8] : memref<256x256xf32, #tpu.memory_space<vmem>>, vector<256x256xf32>
    %cst_9 = arith.constant dense<0.000000e+00> : vector<8x256xf32>
    %12 = tpu.matmul %10, %11, %cst_9 {dimension_numbers = #tpu.dot_dimension_numbers<[1], [0], [0], [1], [0, 0, 1, 1], [], []>} : vector<8x256xf32>, vector<256x256xf32>, vector<8x256xf32> -> vector<8x256xf32>
    %c0_10 = arith.constant 0 : index
    %c0_11 = arith.constant 0 : index
    %13 = vector.load %arg5[%c0_10, %c0_11] : memref<1x256xf32, #tpu.memory_space<vmem>>, vector<1x256xf32>
    %14 = vector.broadcast %13 : vector<1x256xf32> to vector<8x256xf32>
    %15 = arith.addf %12, %14 : vector<8x256xf32>
    %cst_12 = arith.constant 0.000000e+00 : f32
    %16 = vector.broadcast %cst_12 : f32 to vector<8x256xf32>
    %17 = arith.cmpf ogt, %15, %16 : vector<8x256xf32>
    %cst_13 = arith.constant 0.00999999977 : f32
    %18 = vector.broadcast %cst_13 : f32 to vector<8x256xf32>
    %19 = arith.mulf %18, %15 : vector<8x256xf32>
    %20 = arith.select %17, %15, %19 : vector<8x256xi1>, vector<8x256xf32>
    %c0_14 = arith.constant 0 : index
    %c0_15 = arith.constant 0 : index
    %21 = vector.load %arg6[%c0_14, %c0_15] : memref<256x8xf32, #tpu.memory_space<vmem>>, vector<256x8xf32>
    %cst_16 = arith.constant dense<0.000000e+00> : vector<8x8xf32>
    %22 = tpu.matmul %20, %21, %cst_16 {dimension_numbers = #tpu.dot_dimension_numbers<[1], [0], [0], [1], [0, 0, 1, 1], [], []>} : vector<8x256xf32>, vector<256x8xf32>, vector<8x8xf32> -> vector<8x8xf32>
    %c0_17 = arith.constant 0 : index
    %c0_18 = arith.constant 0 : index
    %23 = vector.load %arg7[%c0_17, %c0_18] : memref<1x8xf32, #tpu.memory_space<vmem>>, vector<1x8xf32>
    %24 = vector.broadcast %23 : vector<1x8xf32> to vector<8x8xf32>
    %25 = arith.addf %22, %24 : vector<8x8xf32>
    %c0_19 = arith.constant 0 : index
    %c0_20 = arith.constant 0 : index
    %26 = vector.load %arg8[%c0_19, %c0_20] : memref<8x8xf32, #tpu.memory_space<vmem>>, vector<8x8xf32>
    tpu.vector_store %arg8[%c0_19, %c0_20], %25 {strides = array<i32>} : memref<8x8xf32, #tpu.memory_space<vmem>>, vector<8x8xf32>,
    return
  }
  func.func @transform_0(%arg0: i32) -> (i32, i32) {
    %c0_i32 = arith.constant 0 : i32
    %c0_i32_0 = arith.constant 0 : i32
    return %arg0, %c0_i32 : i32, i32
  }
  func.func @transform_1(%arg0: i32) -> (i32, i32) {
    %c0_i32 = arith.constant 0 : i32
    %c0_i32_0 = arith.constant 0 : i32
    %c0_i32_1 = arith.constant 0 : i32
    return %c0_i32, %c0_i32_0 : i32, i32
  }
  func.func @transform_2(%arg0: i32) -> (i32, i32) {
    %c0_i32 = arith.constant 0 : i32
    %c0_i32_0 = arith.constant 0 : i32
    %c0_i32_1 = arith.constant 0 : i32
    return %c0_i32, %c0_i32_0 : i32, i32
  }
  func.func @transform_3(%arg0: i32) -> (i32, i32) {
    %c0_i32 = arith.constant 0 : i32
    %c0_i32_0 = arith.constant 0 : i32
    %c0_i32_1 = arith.constant 0 : i32
    return %c0_i32, %c0_i32_0 : i32, i32
  }
  func.func @transform_4(%arg0: i32) -> (i32, i32) {
    %c0_i32 = arith.constant 0 : i32
    %c0_i32_0 = arith.constant 0 : i32
    %c0_i32_1 = arith.constant 0 : i32
    return %c0_i32, %c0_i32_0 : i32, i32
  }
  func.func @transform_5(%arg0: i32) -> (i32, i32) {
    %c0_i32 = arith.constant 0 : i32
    %c0_i32_0 = arith.constant 0 : i32
    %c0_i32_1 = arith.constant 0 : i32
    return %c0_i32, %c0_i32_0 : i32, i32
  }
  func.func @transform_6(%arg0: i32) -> (i32, i32) {
    %c0_i32 = arith.constant 0 : i32
    %c0_i32_0 = arith.constant 0 : i32
    %c0_i32_1 = arith.constant 0 : i32
    return %c0_i32, %c0_i32_0 : i32, i32
  }
  func.func @transform_7(%arg0: i32) -> (i32, i32) {
    %c0_i32 = arith.constant 0 : i32
    %c0_i32_0 = arith.constant 0 : i32
    return %arg0, %c0_i32 : i32, i32
  }
}

</mosaic_0001>

<llo_original>
// kernel: nn_model_forward.1
$region0: #{nn_model_forward.1}
  #allocation0 [shape = 'u32[]', space=smem, size = 0x4, offset = 0x4, fixed_abs, tag = 'smem constant byte address 0x4 - core index']
  #allocation1 [shape = 'u32[144,128]{1,0:T(1,128)}', space=vmem, size = 0x12000, scoped, tag = 'internal scratch']
  %s0 = inlined_call_operand.vmem [shape: f32[8,12], index: 0, kind: input, shape index: {}]
  %s1 = inlined_call_operand.vmem [shape: f32[12,256], index: 1, kind: input, shape index: {}]
  %s2 = inlined_call_operand.vmem [shape: f32[1,256], index: 2, kind: input, shape index: {}]
  %s3 = inlined_call_operand.hbm [shape: f32[256,256], index: 3, kind: input, shape index: {}]
  %s4 = inlined_call_operand.vmem [shape: f32[1,256], index: 4, kind: input, shape index: {}]
  %s5 = inlined_call_operand.vmem [shape: f32[256,8], index: 5, kind: input, shape index: {}]
  %s6 = inlined_call_operand.vmem [shape: f32[1,8], index: 6, kind: input, shape index: {}]
  %s7 = inlined_call_operand.hbm [shape: f32[8,8], index: 7, kind: output, shape index: {}]
  %s8 = sld [smem:[#allocation0]]
  $region42: #{nn_model_forward.1} parent=0
    _
  %s10 = ssub.s32 1, %s8
  %s11 = scalar_select 0, %s10, %s8
  $region1: #{nn_model_forward.1} parent=0
    #allocation2 [shape = 'u8[262144]{0}', space=vmem, size = 0x40000, scoped, tag = 'input window, operand 3, single buffered']
    #allocation3 [shape = 's32[1]{0}', space=sflag, size = 0x4, scoped, tag = 'scoped memory for nn_model_forward.1']
    #allocation4 [shape = 's32[1]{0}', space=sflag, size = 0x4, scoped, tag = 'scoped memory for nn_model_forward.1']
    #allocation5 [shape = 'u8[4096]{0}', space=vmem, size = 0x1000, scoped, tag = 'output window, operand 0, single buffered']
    %12 = vsyncpa [#allocation3], 0
    %13 = vsyncpa [#allocation4], 0
    // Predicated region
    $region2: #{nn_model_forward.1} parent=1 // pred_check
      _
    $region3: #{nn_model_forward.1} parent=1 // pred_check_branch
      %15 = sbr.rel (0) target = $region5
    $region4: #{nn_model_forward.1} parent=1 // pred_region
      _
    $region5: #{nn_model_forward.1} parent=1 // pred_fallthru
      _
    // Predicated region
    $region6: #{nn_model_forward.1} parent=1 // pred_check
      _
    $region7: #{nn_model_forward.1} parent=1 // pred_check_branch
      %17 = sbr.rel (0) target = $region9
    $region8: #{nn_model_forward.1} parent=1 // pred_region
      _
    $region9: #{nn_model_forward.1} parent=1 // pred_fallthru
      _
    // Predicated region
    $region10: #{nn_model_forward.1} parent=1 // pred_check
      _
    $region11: #{nn_model_forward.1} parent=1 // pred_check_branch
      %19 = sbr.rel (0) target = $region13
    $region12: #{nn_model_forward.1} parent=1 // pred_region
      _
    $region13: #{nn_model_forward.1} parent=1 // pred_fallthru
      _
    // Predicated region
    $region14: #{nn_model_forward.1} parent=1 // pred_check
      _
    $region15: #{nn_model_forward.1} parent=1 // pred_check_branch
      %21 = sbr.rel (0) target = $region17
    $region16: #{nn_model_forward.1} parent=1 // pred_region
      %s23 = ssub.s32 8192, 8192
      %24 = vsyncadd [#allocation3], %s23
      %s25 = sshll.u32 [#allocation2], 4
      %s26 = int_to_ptr.vmem [resolvable:$true] %s25
      %31 = dma.hbm_to_vmem [thread:$0]  %s3, 8192, %s26, [#allocation3], 256, 256, 16
    $region17: #{nn_model_forward.1} parent=1 // pred_fallthru
      _
    // Predicated region
    $region18: #{nn_model_forward.1} parent=1 // pred_check
      _
    $region19: #{nn_model_forward.1} parent=1 // pred_check_branch
      %33 = sbr.rel (0) target = $region21
    $region20: #{nn_model_forward.1} parent=1 // pred_region
      _
    $region21: #{nn_model_forward.1} parent=1 // pred_fallthru
      _
    // Predicated region
    $region22: #{nn_model_forward.1} parent=1 // pred_check
      _
    $region23: #{nn_model_forward.1} parent=1 // pred_check_branch
      %35 = sbr.rel (0) target = $region25
    $region24: #{nn_model_forward.1} parent=1 // pred_region
      _
    $region25: #{nn_model_forward.1} parent=1 // pred_fallthru
      _
    // Predicated region
    $region26: #{nn_model_forward.1} parent=1 // pred_check
      _
    $region27: #{nn_model_forward.1} parent=1 // pred_check_branch
      %37 = sbr.rel (0) target = $region29
    $region28: #{nn_model_forward.1} parent=1 // pred_region
      _
    $region29: #{nn_model_forward.1} parent=1 // pred_fallthru
      _
    // Predicated region
    $region30: #{nn_model_forward.1} parent=1 // pred_check
      _
    $region31: #{nn_model_forward.1} parent=1 // pred_check_branch
      %39 = sbr.rel (0) target = $region33
    $region32: #{nn_model_forward.1} parent=1 // pred_region
      %40 = dma.done [#allocation3], 8192
    $region33: #{nn_model_forward.1} parent=1 // pred_fallthru
      _
    %v41 = vld [vmem:[%s0] sm:$0xff]
    %v42 = vld [vmem:[%s1] sm:$0xff]
    %v43 = vld [vmem:[%s1 + $0x8] sm:$0xff]
    %v44 = vld [vmem:[%s1 + $0x10] sm:$0xf]
    %v45 = vld [vmem:[%s1 + $0x18] sm:$0xf]
    %v46 = vld [vmem:[%s2] sm:$0x3]
    %v48 = vlaneseq
    %v49 = vshrl.u32 %v48, 7
    %v50 = vsub.s32 0, %v49
    %v51 = vrot.slane %v46, %v50
    %v52 = vlaneseq
    %v53 = vshrl.u32 %v52, 7
    %v54 = vsub.s32 1, %v53
    %v55 = vrot.slane %v46, %v54
    %vm58 = vcmask 97280
    %v60 = vsel %vm58, %v41, 0
    %vm62 = vcmask 1043456
    %v64 = vsel %vm62, %v44, 0
    %v67 = vsel %vm62, %v45, 0
    %69 = vmatprep.subr.mxu0 %v43
    %70 = vmatpush1.msra.mxu0 %v42
    %71 = vmatprep.subr.mxu0 %v67
    %72 = vmatpush1.msra.mxu0 %v64
    %73 = vmatprep.subr.mxu0 0.0
    %74 = vmatpush1.msra.mxu0 0.0
    %75 = vmatprep.subr.mxu0 0.0
    %76 = vmatpush1.msra.mxu0 0.0
    %77 = vmatprep.subr.mxu0 0.0
    %78 = vmatpush1.msra.mxu0 0.0
    %79 = vmatprep.subr.mxu0 0.0
    %80 = vmatpush1.msra.mxu0 0.0
    %81 = vmatprep.subr.mxu0 0.0
    %82 = vmatpush1.msra.mxu0 0.0
    %83 = vmatprep.subr.mxu0 0.0
    %84 = vmatpush1.msra.mxu0 0.0
    %85 = vmatprep.subr.mxu0 0.0
    %86 = vmatpush1.msra.mxu0 0.0
    %87 = vmatprep.subr.mxu0 0.0
    %88 = vmatpush1.msra.mxu0 0.0
    %89 = vmatprep.subr.mxu0 0.0
    %90 = vmatpush1.msra.mxu0 0.0
    %91 = vmatprep.subr.mxu0 0.0
    %92 = vmatpush1.msra.mxu0 0.0
    %93 = vmatprep.subr.mxu0 0.0
    %94 = vmatpush1.msra.mxu0 0.0
    %95 = vmatprep.subr.mxu0 0.0
    %96 = vmatpush1.msra.mxu0 0.0
    %97 = vmatprep.subr.mxu0 0.0
    %98 = vmatpush1.msra.mxu0 0.0
    %99 = vmatprep.subr.mxu0 0.0
    %100 = vmatpush1.msra.mxu0 0.0
    %101 = vmatprep.subr.mxu0 0.0
    %102 = vmatpush1.msra.mxu0 0.0
    %103 = vmatprep.subr.mxu0 0.0
    %104 = vmatpush1.msra.mxu0 0.0
    %105 = vmatprep.subr.mxu0 0.0
    %106 = vmatpush1.msra.mxu0 0.0
    %107 = vmatprep.subr.mxu0 0.0
    %108 = vmatpush1.msra.mxu0 0.0
    %109 = vmatprep.subr.mxu0 0.0
    %110 = vmatpush1.msra.mxu0 0.0
    %111 = vmatprep.subr.mxu0 0.0
    %112 = vmatpush1.msra.mxu0 0.0
    %113 = vmatprep.subr.mxu0 0.0
    %114 = vmatpush1.msra.mxu0 0.0
    %115 = vmatprep.subr.mxu0 0.0
    %116 = vmatpush1.msra.mxu0 0.0
    %117 = vmatprep.subr.mxu0 0.0
    %118 = vmatpush1.msra.mxu0 0.0
    %119 = vmatprep.subr.mxu0 0.0
    %120 = vmatpush1.msra.mxu0 0.0
    %121 = vmatprep.subr.mxu0 0.0
    %122 = vmatpush1.msra.mxu0 0.0
    %123 = vmatprep.subr.mxu0 0.0
    %124 = vmatpush1.msra.mxu0 0.0
    %125 = vmatprep.subr.mxu0 0.0
    %126 = vmatpush1.msra.mxu0 0.0
    %127 = vmatprep.subr.mxu0 0.0
    %128 = vmatpush1.msra.mxu0 0.0
    %129 = vmatprep.subr.mxu0 0.0
    %130 = vmatpush1.msra.mxu0 0.0
    %131 = vmatprep.subr.mxu0 0.0
    %132 = vmatpush1.msra.mxu0 0.0
    %133 = vmatprep.mubr.f32.mxu0 0.0
    %134 = vmatmul.mubr.f32.gmra.mrb[0].mxu0 %v60
    %v135 = vpop.f32.mrb[0].mxu0
    %v136 = vadd.f32 %v51, %v135
    %v137 = vpop.f32.mrb[0].mxu0
    %v138 = vadd.f32 %v55, %v137
    %139 = vdwg.mxu0
    %vm140 = vcmp.gt.f32.partialorder %v136, 0.0
    %vm141 = vcmp.gt.f32.partialorder %v138, 0.0
    %v142 = vmul.f32 %v136, 0.01
    %v143 = vmul.f32 %v138, 0.01
    %v144 = vsel %vm140, %v136, %v142
    %v145 = vsel %vm141, %v138, %v143
    %v146 = vld [vmem:[#allocation2] sm:$0xff]
    %v147 = vld [vmem:[#allocation2 + $0x8] sm:$0xff]
    %v148 = vld [vmem:[#allocation2 + $0x10] sm:$0xff]
    %v149 = vld [vmem:[#allocation2 + $0x18] sm:$0xff]
    %v150 = vld [vmem:[#allocation2 + $0x20] sm:$0xff]
    %v151 = vld [vmem:[#allocation2 + $0x28] sm:$0xff]
    %v152 = vld [vmem:[#allocation2 + $0x30] sm:$0xff]
    %v153 = vld [vmem:[#allocation2 + $0x38] sm:$0xff]
    %v154 = vld [vmem:[#allocation2 + $0x40] sm:$0xff]
    %v155 = vld [vmem:[#allocation2 + $0x48] sm:$0xff]
    %v156 = vld [vmem:[#allocation2 + $0x50] sm:$0xff]
    %v157 = vld [vmem:[#allocation2 + $0x58] sm:$0xff]
    %v158 = vld [vmem:[#allocation2 + $0x60] sm:$0xff]
    %v159 = vld [vmem:[#allocation2 + $0x68] sm:$0xff]
    %v160 = vld [vmem:[#allocation2 + $0x70] sm:$0xff]
    %v161 = vld [vmem:[#allocation2 + $0x78] sm:$0xff]
    %v162 = vld [vmem:[#allocation2 + $0x80] sm:$0xff]
    %v163 = vld [vmem:[#allocation2 + $0x88] sm:$0xff]
    %v164 = vld [vmem:[#allocation2 + $0x90] sm:$0xff]
    %v165 = vld [vmem:[#allocation2 + $0x98] sm:$0xff]
    %v166 = vld [vmem:[#allocation2 + $0xa0] sm:$0xff]
    %v167 = vld [vmem:[#allocation2 + $0xa8] sm:$0xff]
    %v168 = vld [vmem:[#allocation2 + $0xb0] sm:$0xff]
    %v169 = vld [vmem:[#allocation2 + $0xb8] sm:$0xff]
    %v170 = vld [vmem:[#allocation2 + $0xc0] sm:$0xff]
    %v171 = vld [vmem:[#allocation2 + $0xc8] sm:$0xff]
    %v172 = vld [vmem:[#allocation2 + $0xd0] sm:$0xff]
    %v173 = vld [vmem:[#allocation2 + $0xd8] sm:$0xff]
    %v174 = vld [vmem:[#allocation2 + $0xe0] sm:$0xff]
    %v175 = vld [vmem:[#allocation2 + $0xe8] sm:$0xff]
    %v176 = vld [vmem:[#allocation2 + $0xf0] sm:$0xff]
    %v177 = vld [vmem:[#allocation2 + $0xf8] sm:$0xff]
    %v178 = vld [vmem:[#allocation2 + $0x100] sm:$0xff]
    %v179 = vld [vmem:[#allocation2 + $0x108] sm:$0xff]
    %v180 = vld [vmem:[#allocation2 + $0x110] sm:$0xff]
    %v181 = vld [vmem:[#allocation2 + $0x118] sm:$0xff]
    %v182 = vld [vmem:[#allocation2 + $0x120] sm:$0xff]
    %v183 = vld [vmem:[#allocation2 + $0x128] sm:$0xff]
    %v184 = vld [vmem:[#allocation2 + $0x130] sm:$0xff]
    %v185 = vld [vmem:[#allocation2 + $0x138] sm:$0xff]
    %v186 = vld [vmem:[#allocation2 + $0x140] sm:$0xff]
    %v187 = vld [vmem:[#allocation2 + $0x148] sm:$0xff]
    %v188 = vld [vmem:[#allocation2 + $0x150] sm:$0xff]
    %v189 = vld [vmem:[#allocation2 + $0x158] sm:$0xff]
    %v190 = vld [vmem:[#allocation2 + $0x160] sm:$0xff]
    %v191 = vld [vmem:[#allocation2 + $0x168] sm:$0xff]
    %v192 = vld [vmem:[#allocation2 + $0x170] sm:$0xff]
    %v193 = vld [vmem:[#allocation2 + $0x178] sm:$0xff]
    %v194 = vld [vmem:[#allocation2 + $0x180] sm:$0xff]
    %v195 = vld [vmem:[#allocation2 + $0x188] sm:$0xff]
    %v196 = vld [vmem:[#allocation2 + $0x190] sm:$0xff]
    %v197 = vld [vmem:[#allocation2 + $0x198] sm:$0xff]
    %v198 = vld [vmem:[#allocation2 + $0x1a0] sm:$0xff]
    %v199 = vld [vmem:[#allocation2 + $0x1a8] sm:$0xff]
    %v200 = vld [vmem:[#allocation2 + $0x1b0] sm:$0xff]
    %v201 = vld [vmem:[#allocation2 + $0x1b8] sm:$0xff]
    %v202 = vld [vmem:[#allocation2 + $0x1c0] sm:$0xff]
    %v203 = vld [vmem:[#allocation2 + $0x1c8] sm:$0xff]
    %v204 = vld [vmem:[#allocation2 + $0x1d0] sm:$0xff]
    %v205 = vld [vmem:[#allocation2 + $0x1d8] sm:$0xff]
    %v206 = vld [vmem:[#allocation2 + $0x1e0] sm:$0xff]
    %v207 = vld [vmem:[#allocation2 + $0x1e8] sm:$0xff]
    %v208 = vld [vmem:[#allocation2 + $0x1f0] sm:$0xff]
    %v209 = vld [vmem:[#allocation2 + $0x1f8] sm:$0xff]
    %v210 = vld [vmem:[%s4] sm:$0x3]
    %v212 = vlaneseq
    %v213 = vshrl.u32 %v212, 7
    %v214 = vsub.s32 0, %v213
    %v215 = vrot.slane %v210, %v214
    %v216 = vlaneseq
    %v217 = vshrl.u32 %v216, 7
    %v218 = vsub.s32 1, %v217
    %v219 = vrot.slane %v210, %v218
    %222 = vmatprep.subr.mxu0 %v147
    %223 = vmatpush1.msra.mxu0 %v146
    %224 = vmatprep.subr.mxu0 %v149
    %225 = vmatpush1.msra.mxu0 %v148
    %226 = vmatprep.subr.mxu0 %v151
    %227 = vmatpush1.msra.mxu0 %v150
    %228 = vmatprep.subr.mxu0 %v153
    %229 = vmatpush1.msra.mxu0 %v152
    %230 = vmatprep.subr.mxu0 %v155
    %231 = vmatpush1.msra.mxu0 %v154
    %232 = vmatprep.subr.mxu0 %v157
    %233 = vmatpush1.msra.mxu0 %v156
    %234 = vmatprep.subr.mxu0 %v159
    %235 = vmatpush1.msra.mxu0 %v158
    %236 = vmatprep.subr.mxu0 %v161
    %237 = vmatpush1.msra.mxu0 %v160
    %238 = vmatprep.subr.mxu0 %v163
    %239 = vmatpush1.msra.mxu0 %v162
    %240 = vmatprep.subr.mxu0 %v165
    %241 = vmatpush1.msra.mxu0 %v164
    %242 = vmatprep.subr.mxu0 %v167
    %243 = vmatpush1.msra.mxu0 %v166
    %244 = vmatprep.subr.mxu0 %v169
    %245 = vmatpush1.msra.mxu0 %v168
    %246 = vmatprep.subr.mxu0 %v171
    %247 = vmatpush1.msra.mxu0 %v170
    %248 = vmatprep.subr.mxu0 %v173
    %249 = vmatpush1.msra.mxu0 %v172
    %250 = vmatprep.subr.mxu0 %v175
    %251 = vmatpush1.msra.mxu0 %v174
    %252 = vmatprep.subr.mxu0 %v177
    %253 = vmatpush1.msra.mxu0 %v176
    %254 = vmatprep.subr.mxu0 %v179
    %255 = vmatpush1.msra.mxu0 %v178
    %256 = vmatprep.subr.mxu0 %v181
    %257 = vmatpush1.msra.mxu0 %v180
    %258 = vmatprep.subr.mxu0 %v183
    %259 = vmatpush1.msra.mxu0 %v182
    %260 = vmatprep.subr.mxu0 %v185
    %261 = vmatpush1.msra.mxu0 %v184
    %262 = vmatprep.subr.mxu0 %v187
    %263 = vmatpush1.msra.mxu0 %v186
    %264 = vmatprep.subr.mxu0 %v189
    %265 = vmatpush1.msra.mxu0 %v188
    %266 = vmatprep.subr.mxu0 %v191
    %267 = vmatpush1.msra.mxu0 %v190
    %268 = vmatprep.subr.mxu0 %v193
    %269 = vmatpush1.msra.mxu0 %v192
    %270 = vmatprep.subr.mxu0 %v195
    %271 = vmatpush1.msra.mxu0 %v194
    %272 = vmatprep.subr.mxu0 %v197
    %273 = vmatpush1.msra.mxu0 %v196
    %274 = vmatprep.subr.mxu0 %v199
    %275 = vmatpush1.msra.mxu0 %v198
    %276 = vmatprep.subr.mxu0 %v201
    %277 = vmatpush1.msra.mxu0 %v200
    %278 = vmatprep.subr.mxu0 %v203
    %279 = vmatpush1.msra.mxu0 %v202
    %280 = vmatprep.subr.mxu0 %v205
    %281 = vmatpush1.msra.mxu0 %v204
    %282 = vmatprep.subr.mxu0 %v207
    %283 = vmatpush1.msra.mxu0 %v206
    %284 = vmatprep.subr.mxu0 %v209
    %285 = vmatpush1.msra.mxu0 %v208
    %286 = vmatprep.mubr.f32.mxu0 %v145
    %287 = vmatmul.mubr.f32.gmra.mrb[0].mxu0 %v144
    %v288 = vpop.f32.mrb[0].mxu0
    %v289 = vadd.f32 %v215, %v288
    %v290 = vpop.f32.mrb[0].mxu0
    %v291 = vadd.f32 %v219, %v290
    %292 = vdwg.mxu0
    %vm293 = vcmp.gt.f32.partialorder %v289, 0.0
    %vm294 = vcmp.gt.f32.partialorder %v291, 0.0
    %v295 = vmul.f32 %v289, 0.01
    %v296 = vmul.f32 %v291, 0.01
    %v297 = vsel %vm293, %v289, %v295
    %v298 = vsel %vm294, %v291, %v296
    %v299 = vld [vmem:[%s5] sm:$0xff]
    %v300 = vld [vmem:[%s5 + $0x8] sm:$0xff]
    %v301 = vld [vmem:[%s5 + $0x10] sm:$0xff]
    %v302 = vld [vmem:[%s5 + $0x18] sm:$0xff]
    %v303 = vld [vmem:[%s5 + $0x20] sm:$0xff]
    %v304 = vld [vmem:[%s5 + $0x28] sm:$0xff]
    %v305 = vld [vmem:[%s5 + $0x30] sm:$0xff]
    %v306 = vld [vmem:[%s5 + $0x38] sm:$0xff]
    %v307 = vld [vmem:[%s5 + $0x40] sm:$0xff]
    %v308 = vld [vmem:[%s5 + $0x48] sm:$0xff]
    %v309 = vld [vmem:[%s5 + $0x50] sm:$0xff]
    %v310 = vld [vmem:[%s5 + $0x58] sm:$0xff]
    %v311 = vld [vmem:[%s5 + $0x60] sm:$0xff]
    %v312 = vld [vmem:[%s5 + $0x68] sm:$0xff]
    %v313 = vld [vmem:[%s5 + $0x70] sm:$0xff]
    %v314 = vld [vmem:[%s5 + $0x78] sm:$0xff]
    %v315 = vld [vmem:[%s5 + $0x80] sm:$0xff]
    %v316 = vld [vmem:[%s5 + $0x88] sm:$0xff]
    %v317 = vld [vmem:[%s5 + $0x90] sm:$0xff]
    %v318 = vld [vmem:[%s5 + $0x98] sm:$0xff]
    %v319 = vld [vmem:[%s5 + $0xa0] sm:$0xff]
    %v320 = vld [vmem:[%s5 + $0xa8] sm:$0xff]
    %v321 = vld [vmem:[%s5 + $0xb0] sm:$0xff]
    %v322 = vld [vmem:[%s5 + $0xb8] sm:$0xff]
    %v323 = vld [vmem:[%s5 + $0xc0] sm:$0xff]
    %v324 = vld [vmem:[%s5 + $0xc8] sm:$0xff]
    %v325 = vld [vmem:[%s5 + $0xd0] sm:$0xff]
    %v326 = vld [vmem:[%s5 + $0xd8] sm:$0xff]
    %v327 = vld [vmem:[%s5 + $0xe0] sm:$0xff]
    %v328 = vld [vmem:[%s5 + $0xe8] sm:$0xff]
    %v329 = vld [vmem:[%s5 + $0xf0] sm:$0xff]
    %v330 = vld [vmem:[%s5 + $0xf8] sm:$0xff]
    %v331 = vld [vmem:[%s6] sm:$0x1]
    %v333 = vlaneseq
    %v334 = vshrl.u32 %v333, 7
    %v335 = vsub.s32 0, %v334
    %v336 = vrot.slane %v331, %v335
    %338 = vmatprep.subr.mxu0 0.0
    %339 = vmatpush1.msra.mxu0 %v299
    %340 = vmatprep.subr.mxu0 0.0
    %341 = vmatpush1.msra.mxu0 %v300
    %342 = vmatprep.subr.mxu0 0.0
    %343 = vmatpush1.msra.mxu0 %v301
    %344 = vmatprep.subr.mxu0 0.0
    %345 = vmatpush1.msra.mxu0 %v302
    %346 = vmatprep.subr.mxu0 0.0
    %347 = vmatpush1.msra.mxu0 %v303
    %348 = vmatprep.subr.mxu0 0.0
    %349 = vmatpush1.msra.mxu0 %v304
    %350 = vmatprep.subr.mxu0 0.0
    %351 = vmatpush1.msra.mxu0 %v305
    %352 = vmatprep.subr.mxu0 0.0
    %353 = vmatpush1.msra.mxu0 %v306
    %354 = vmatprep.subr.mxu0 0.0
    %355 = vmatpush1.msra.mxu0 %v307
    %356 = vmatprep.subr.mxu0 0.0
    %357 = vmatpush1.msra.mxu0 %v308
    %358 = vmatprep.subr.mxu0 0.0
    %359 = vmatpush1.msra.mxu0 %v309
    %360 = vmatprep.subr.mxu0 0.0
    %361 = vmatpush1.msra.mxu0 %v310
    %362 = vmatprep.subr.mxu0 0.0
    %363 = vmatpush1.msra.mxu0 %v311
    %364 = vmatprep.subr.mxu0 0.0
    %365 = vmatpush1.msra.mxu0 %v312
    %366 = vmatprep.subr.mxu0 0.0
    %367 = vmatpush1.msra.mxu0 %v313
    %368 = vmatprep.subr.mxu0 0.0
    %369 = vmatpush1.msra.mxu0 %v314
    %370 = vmatprep.subr.mxu0 0.0
    %371 = vmatpush1.msra.mxu0 %v315
    %372 = vmatprep.subr.mxu0 0.0
    %373 = vmatpush1.msra.mxu0 %v316
    %374 = vmatprep.subr.mxu0 0.0
    %375 = vmatpush1.msra.mxu0 %v317
    %376 = vmatprep.subr.mxu0 0.0
    %377 = vmatpush1.msra.mxu0 %v318
    %378 = vmatprep.subr.mxu0 0.0
    %379 = vmatpush1.msra.mxu0 %v319
    %380 = vmatprep.subr.mxu0 0.0
    %381 = vmatpush1.msra.mxu0 %v320
    %382 = vmatprep.subr.mxu0 0.0
    %383 = vmatpush1.msra.mxu0 %v321
    %384 = vmatprep.subr.mxu0 0.0
    %385 = vmatpush1.msra.mxu0 %v322
    %386 = vmatprep.subr.mxu0 0.0
    %387 = vmatpush1.msra.mxu0 %v323
    %388 = vmatprep.subr.mxu0 0.0
    %389 = vmatpush1.msra.mxu0 %v324
    %390 = vmatprep.subr.mxu0 0.0
    %391 = vmatpush1.msra.mxu0 %v325
    %392 = vmatprep.subr.mxu0 0.0
    %393 = vmatpush1.msra.mxu0 %v326
    %394 = vmatprep.subr.mxu0 0.0
    %395 = vmatpush1.msra.mxu0 %v327
    %396 = vmatprep.subr.mxu0 0.0
    %397 = vmatpush1.msra.mxu0 %v328
    %398 = vmatprep.subr.mxu0 0.0
    %399 = vmatpush1.msra.mxu0 %v329
    %400 = vmatprep.subr.mxu0 0.0
    %401 = vmatpush1.msra.mxu0 %v330
    %402 = vmatprep.mubr.f32.mxu0 %v298
    %403 = vmatmul.mubr.f32.gmra.mrb[0].mxu0 %v297
    %v404 = vpop.f32.mrb[0].mxu0
    %v405 = vadd.f32 %v336, %v404
    %v406 = vpop.f32.mrb[0].mxu0
    %407 = vdwg.mxu0
    %vm408 = vcmask 64512
    %409 = vst.msk [vmem:[#allocation5] sm:$0xff] %vm408, %v405
    // Predicated region
    $region34: #{nn_model_forward.1} parent=1 // pred_check
      _
    $region35: #{nn_model_forward.1} parent=1 // pred_check_branch
      %411 = sbr.rel (0) target = $region37
    $region36: #{nn_model_forward.1} parent=1 // pred_region
      %s413 = ssub.s32 128, 128
      %414 = vsyncadd [#allocation4], %s413
      %s416 = sshll.u32 [#allocation5], 4
      %s417 = int_to_ptr.vmem [resolvable:$true] %s416
      %419 = dma.vmem_to_hbm [thread:$0]  %s417, 128, %s7, [#allocation4]
    $region37: #{nn_model_forward.1} parent=1 // pred_fallthru
      _
    // Predicated region
    $region38: #{nn_model_forward.1} parent=1 // pred_check
      _
    $region39: #{nn_model_forward.1} parent=1 // pred_check_branch
      %421 = sbr.rel (0) target = $region41
    $region40: #{nn_model_forward.1} parent=1 // pred_region
      %422 = dma.done [#allocation4], 128
    $region41: #{nn_model_forward.1} parent=1 // pred_fallthru
      _
    %423 = vsyncpa [#allocation3], 1
    %424 = vsyncpa [#allocation4], 1

</llo_original>
